<compile_context>
chip_gen: v6e
topology: v6e:2x2x1
jax: 0.10.0
libtpu: 0.0.40
codegen_flags: <defaults>
</compile_context>

<pallas_src>
import functools

import jax
import jax.numpy as jnp
from jax import lax
from jax.experimental import pallas as pl
from jax.experimental.pallas import tpu as pltpu

NUM_FEATURE_LAYERS = 5  # vgg19.features[i] for i in [1, 6, 11, 20, 29] -> all ReLU


def _round_up(x, m):
    return ((x + m - 1) // m) * m


def _sublane(dtype):
    """Second-to-last block-dim granularity per dtype (f32:8, bf16:16, int8:32)."""
    return {4: 8, 2: 16, 1: 32}.get(jnp.dtype(dtype).itemsize, 8)


def _choose_lane(total, sub):
    """Largest lane width (multiple of 128) that divides `total` with >= sub rows."""
    for lane in (1024, 512, 256, 128):
        if total % lane == 0 and total // lane >= sub:
            return lane
    return None


def _perceptual_loss_kernel(g_ref, t_ref, psum_ref, *, valid_rows, block_rows, lane):
    """Per-block partial sums of (relu(g) - relu(t))**2, reduced to (8, lane).

    `valid_rows`, `block_rows`, `lane` are static (closed over), so the ragged-
    tail mask is only compiled in when the grid's last block is actually partial.
    """
    g = jnp.maximum(g_ref[...].astype(jnp.float32), 0.0)
    t = jnp.maximum(t_ref[...].astype(jnp.float32), 0.0)
    d = g - t
    d2 = d * d

    if valid_rows % block_rows != 0:  # static: last block overhangs the array
        row0 = pl.program_id(0) * block_rows
        rid = row0 + lax.broadcasted_iota(jnp.int32, (block_rows, 1), 0)
        # where() (not multiply) so garbage/NaN in the OOB rows cannot propagate.
        d2 = jnp.where(rid < valid_rows, d2, 0.0)

    # Reduce block_rows -> 8 sublanes with pure VPU adds (layout-preserving
    # reshape, no XLU reduce); the store is a full, unmasked (8, lane) block.
    psum_ref[...] = jnp.sum(d2.reshape(block_rows // 8, 8, lane), axis=0)


@functools.partial(jax.jit, static_argnames=("block_elems_max", "vmem_limit_bytes"))
def perceptual_loss(generated, target, *, block_elems_max=1 << 20,
                    vmem_limit_bytes=40 << 20):
    """5 * MSE(relu(generated), relu(target)) == the PyTorch module's forward.

    `generated`, `target`: arrays of identical shape/dtype (NCHW expected).
    bf16 inputs are streamed as bf16 and upcast in-kernel.
    """
    assert generated.shape == target.shape
    total = generated.size          # static under jit
    n_elems = float(total)
    sub = _sublane(generated.dtype)

    lane = _choose_lane(total, sub)
    if lane is None:
        # Rare fallback: element count not a multiple of 128 (or fewer than one
        # full tile of rows).  Pad flat copies; relu(0)-relu(0)=0 contributes
        # nothing and we divide by the true element count below.
        lane = 128
        padded = _round_up(total, sub * lane)
        g_flat = jnp.pad(generated.reshape(-1), (0, padded - total))
        t_flat = jnp.pad(target.reshape(-1), (0, padded - total))
        rows = padded // lane
        g2, t2 = g_flat.reshape(rows, lane), t_flat.reshape(rows, lane)
    else:
        # Common path: free bitcast view, no padding, no extra HBM traffic.
        rows = total // lane
        g2, t2 = generated.reshape(rows, lane), target.reshape(rows, lane)

    # ~4 MiB-of-f32-equivalent blocks by default; cap so grid >= 2 whenever
    # there is enough data (keeps both v7x TensorCores streaming HBM).
    block_rows_cap = max(sub, (block_elems_max // lane) // sub * sub)
    half_rows = _round_up(pl.cdiv(rows, 2), sub)
    block_rows = max(sub, min(block_rows_cap, half_rows))
    grid = pl.cdiv(rows, block_rows)

    kernel = functools.partial(_perceptual_loss_kernel, valid_rows=rows,
                               block_rows=block_rows, lane=lane)

    in_bytes = 2 * rows * lane * g2.dtype.itemsize
    out_bytes = grid * 8 * lane * 4

    psums = pl.pallas_call(
        kernel,
        out_shape=jax.ShapeDtypeStruct((grid * 8, lane), jnp.float32),
        grid=(grid,),
        in_specs=[
            pl.BlockSpec((block_rows, lane), lambda i: (i, 0)),
            pl.BlockSpec((block_rows, lane), lambda i: (i, 0)),
        ],
        out_specs=pl.BlockSpec((8, lane), lambda i: (i, 0)),
        compiler_params=pltpu.CompilerParams(
            dimension_semantics=("parallel",),
            vmem_limit_bytes=vmem_limit_bytes,
        ),
        cost_estimate=pl.CostEstimate(
            flops=4 * rows * lane,
            transcendentals=0,
            bytes_accessed=in_bytes + out_bytes,
        ),
    )(g2, t2)

    # Tiny final reduction; fold the 5 identical layer losses into one scale.
    return jnp.sum(psums) * jnp.float32(NUM_FEATURE_LAYERS / n_elems)


def perceptual_loss_ref(generated, target):
    """Pure-JAX reference reproducing the original 5-layer loop verbatim."""
    g = generated.astype(jnp.float32)
    t = target.astype(jnp.float32)
    loss = jnp.float32(0.0)
    for _ in range(NUM_FEATURE_LAYERS):
        g = jnp.maximum(g, 0.0)                 # layer(generated)  (ReLU)
        t = jnp.maximum(t, 0.0)                 # layer(target)     (ReLU)
        loss = loss + jnp.mean((g - t) ** 2)    # nn.MSELoss (mean reduction)
    return loss


if __name__ == "__main__":
    key = jax.random.PRNGKey(0)
    ks = jax.random.split(key, 8)

    def check(g, t, rtol=1e-4, atol=1e-5):
        loss = jax.block_until_ready(perceptual_loss(g, t))
        ref = jax.block_until_ready(perceptual_loss_ref(g, t))
        assert jnp.allclose(loss, ref, rtol=rtol, atol=atol), (loss, ref)

    # 1) Primary small NCHW input: total=1536 -> lane=128, rows=12, grid=2 with
    #    a ragged final block (exercises the in-kernel row mask, no padding).
    check(jax.random.normal(ks[0], (2, 3, 16, 16), dtype=jnp.float32),
          jax.random.normal(ks[1], (2, 3, 16, 16), dtype=jnp.float32))

    # 2) Exact-divide path: total=8192 -> lane=1024, rows=8, grid=1, no mask.
    check(jax.random.normal(ks[2], (2, 4, 32, 32), dtype=jnp.float32),
          jax.random.normal(ks[3], (2, 4, 32, 32), dtype=jnp.float32))

    # 3) bf16 inputs streamed as bf16 (in-kernel f32 upcast), multi-step grid
    #    with bf16-granular (16-row) blocks and a ragged final block.
    check(jax.random.normal(ks[4], (2, 3, 64, 64), dtype=jnp.bfloat16),
          jax.random.normal(ks[5], (2, 3, 64, 64), dtype=jnp.bfloat16))

    # 4) Rare fallback: total=867 (not a multiple of 128) -> tiny pad path.
    check(jax.random.normal(ks[6], (1, 3, 17, 17), dtype=jnp.float32),
          jax.random.normal(ks[7], (1, 3, 17, 17), dtype=jnp.float32))

    print("KERNEL_OK")
</pallas_src>

<mosaic_0001>
module attributes {stable_mosaic.version = 11 : i64} {
  func.func @_perceptual_loss_kernel(%arg0: i32, %arg1: memref<8x128xf32, #tpu.memory_space<vmem>>, %arg2: memref<8x128xf32, #tpu.memory_space<vmem>>, %arg3: memref<8x128xf32, #tpu.memory_space<vmem>>) attributes {dimension_semantics = [#tpu.dimension_semantics<parallel>], iteration_bounds = array<i64: 2>, scalar_prefetch = 0 : i64, scratch_operands = 0 : i64, tpu.core_type = #tpu.core_type<tc>, window_params = [{transform_indices = @transform_0, window_bounds = array<i64: 8, 128>}, {transform_indices = @transform_1, window_bounds = array<i64: 8, 128>}, {transform_indices = @transform_2, window_bounds = array<i64: 8, 128>}]} {
    %c0 = arith.constant 0 : index
    %c0_0 = arith.constant 0 : index
    %0 = vector.load %arg1[%c0, %c0_0] : memref<8x128xf32, #tpu.memory_space<vmem>>, vector<8x128xf32>
    %cst = arith.constant 0.000000e+00 : f32
    %1 = vector.broadcast %cst : f32 to vector<8x128xf32>
    %2 = arith.maximumf %0, %1 : vector<8x128xf32>
    %c0_1 = arith.constant 0 : index
    %c0_2 = arith.constant 0 : index
    %3 = vector.load %arg2[%c0_1, %c0_2] : memref<8x128xf32, #tpu.memory_space<vmem>>, vector<8x128xf32>
    %cst_3 = arith.constant 0.000000e+00 : f32
    %4 = vector.broadcast %cst_3 : f32 to vector<8x128xf32>
    %5 = arith.maximumf %3, %4 : vector<8x128xf32>
    %6 = arith.subf %2, %5 : vector<8x128xf32>
    %7 = arith.mulf %6, %6 : vector<8x128xf32>
    %c8_i32 = arith.constant 8 : i32
    %8 = arith.muli %arg0, %c8_i32 : i32
    %9 = tpu.iota {dimensions = array<i32: 0>} : vector<8x1xi32>
    %10 = vector.broadcast %8 : i32 to vector<8x1xi32>
    %11 = arith.addi %10, %9 : vector<8x1xi32>
    %c12_i32 = arith.constant 12 : i32
    %12 = vector.broadcast %c12_i32 : i32 to vector<8x1xi32>
    %13 = arith.cmpi slt, %11, %12 : vector<8x1xi32>
    %cst_4 = arith.constant 0.000000e+00 : f32
    %14 = vector.shape_cast %13 : vector<8x1xi1> to vector<8x1xi1>
    %15 = vector.broadcast %14 : vector<8x1xi1> to vector<8x128xi1>
    %16 = vector.broadcast %cst_4 : f32 to vector<8x128xf32>
    %17 = arith.select %15, %7, %16 : vector<8x128xi1>, vector<8x128xf32>
    %18 = vector.shape_cast %17 : vector<8x128xf32> to vector<1x8x128xf32>
    %cst_5 = arith.constant dense<0.000000e+00> : vector<8x128xf32>
    %19 = vector.multi_reduction <add>, %18, %cst_5 [0] : vector<1x8x128xf32> to vector<8x128xf32>
    %c0_6 = arith.constant 0 : index
    %c0_7 = arith.constant 0 : index
    %20 = vector.load %arg3[%c0_6, %c0_7] : memref<8x128xf32, #tpu.memory_space<vmem>>, vector<8x128xf32>
    tpu.vector_store %arg3[%c0_6, %c0_7], %19 {strides = array<i32>} : memref<8x128xf32, #tpu.memory_space<vmem>>, vector<8x128xf32>,
    return
  }
  func.func @transform_0(%arg0: i32) -> (i32, i32) {
    %c0_i32 = arith.constant 0 : i32
    %c0_i32_0 = arith.constant 0 : i32
    return %arg0, %c0_i32 : i32, i32
  }
  func.func @transform_1(%arg0: i32) -> (i32, i32) {
    %c0_i32 = arith.constant 0 : i32
    %c0_i32_0 = arith.constant 0 : i32
    return %arg0, %c0_i32 : i32, i32
  }
  func.func @transform_2(%arg0: i32) -> (i32, i32) {
    %c0_i32 = arith.constant 0 : i32
    %c0_i32_0 = arith.constant 0 : i32
    return %arg0, %c0_i32 : i32, i32
  }
}

</mosaic_0001>

<llo_original>
// kernel: perceptual_loss.1
$region0: #{perceptual_loss.1}
  #allocation0 [shape = 'u32[]', space=smem, size = 0x4, offset = 0x4, fixed_abs, tag = 'smem constant byte address 0x4 - core index']
  #allocation1 [shape = 'u32[144,128]{1,0:T(1,128)}', space=vmem, size = 0x12000, scoped, tag = 'internal scratch']
  %s0 = inlined_call_operand.vmem [shape: f32[12,128], index: 0, kind: input, shape index: {}]
  %s1 = inlined_call_operand.vmem [shape: f32[12,128], index: 1, kind: input, shape index: {}]
  %s2 = inlined_call_operand.vmem [shape: f32[16,128], index: 2, kind: output, shape index: {}]
  %s3 = sld [smem:[#allocation0]]
  $region41: #{perceptual_loss.1} parent=0
    _
  %s5 = ssub.s32 1, %s3
  %s6 = scalar_select 0, %s5, %s3
  loop: start=0, step=1, limit=4
  $region2: #{perceptual_loss.1} parent=0 // loop_pre_header
    _
  $region3: #{perceptual_loss.1} parent=0 // loop_header
    %s8 = sphi 0, %s12
    %p9 = scmp.ge.s32.totalorder %s8, 4
    %s18 = sphi 0, %s20
    %s21 = sphi 0, %s18
    %s22 = sphi 0, %s21
    %s38 = sphi 0, %s22
    %s44 = sphi 0, %s46
    %s47 = sphi 0, %s44
    %s48 = sphi 0, %s47
    %s64 = sphi 0, %s48
    %s70 = sphi 0, %s72
    %s73 = sphi 0, %s70
    %s74 = sphi 0, %s73
    %s90 = sphi 0, %s74
  $region4: #{perceptual_loss.1} parent=0 // loop_header_branch
    %11 = sbr.rel (%p9) target = $region8
  $region5: #{perceptual_loss.1} parent=0 // loop_body
    %s13 = ssub.s32 %s8, 1
    %s14 = ssub.s32 %s8, 2
    %s15 = sadd.s32 %s8, 1
    %s16 = ssub.s32 %s8, %s15
    %p17 = scmp.eq.s32.totalorder %s16, 0
    %s19 = sadd.s32 %s18, 1
    %s20 = scalar_select %p17, %s18, %s19
    %p23 = pneg %p17
    %p24 = scmp.eq.s32.totalorder %s8, 1
    %p25 = por %p23, %p24
    %p26 = scmp.ne.s32.totalorder %s18, %s21
    %p27 = scmp.eq.s32.totalorder %s8, 0
    %p28 = por %p26, %p27
    %p29 = scmp.ne.s32.totalorder %s18, %s21
    %p30 = scmp.eq.s32.totalorder %s13, 1
    %p31 = por %p29, %p30
    %p32 = scmp.ne.s32.totalorder %s21, %s22
    %p33 = scmp.eq.s32.totalorder %s13, 0
    %p34 = por %p32, %p33
    %p35 = scmp.ne.s32.totalorder %s21, %s22
    %p36 = scmp.eq.s32.totalorder %s14, 1
    %p37 = por %p35, %p36
    %p39 = scmp.ne.s32.totalorder %s22, %s38
    %p40 = scmp.eq.s32.totalorder %s14, 0
    %p41 = por %p39, %p40
    %s42 = ssub.s32 %s8, %s15
    %p43 = scmp.eq.s32.totalorder %s42, 0
    %s45 = sadd.s32 %s44, 1
    %s46 = scalar_select %p43, %s44, %s45
    %p49 = pneg %p43
    %p50 = scmp.eq.s32.totalorder %s8, 1
    %p51 = por %p49, %p50
    %p52 = scmp.ne.s32.totalorder %s44, %s47
    %p53 = scmp.eq.s32.totalorder %s8, 0
    %p54 = por %p52, %p53
    %p55 = scmp.ne.s32.totalorder %s44, %s47
    %p56 = scmp.eq.s32.totalorder %s13, 1
    %p57 = por %p55, %p56
    %p58 = scmp.ne.s32.totalorder %s47, %s48
    %p59 = scmp.eq.s32.totalorder %s13, 0
    %p60 = por %p58, %p59
    %p61 = scmp.ne.s32.totalorder %s47, %s48
    %p62 = scmp.eq.s32.totalorder %s14, 1
    %p63 = por %p61, %p62
    %p65 = scmp.ne.s32.totalorder %s48, %s64
    %p66 = scmp.eq.s32.totalorder %s14, 0
    %p67 = por %p65, %p66
    %s68 = ssub.s32 %s8, %s15
    %p69 = scmp.eq.s32.totalorder %s68, 0
    %s71 = sadd.s32 %s70, 1
    %s72 = scalar_select %p69, %s70, %s71
    %p75 = pneg %p69
    %p76 = scmp.eq.s32.totalorder %s8, 1
    %p77 = por %p75, %p76
    %p78 = scmp.ne.s32.totalorder %s70, %s73
    %p79 = scmp.eq.s32.totalorder %s8, 0
    %p80 = por %p78, %p79
    %p81 = scmp.ne.s32.totalorder %s70, %s73
    %p82 = scmp.eq.s32.totalorder %s13, 1
    %p83 = por %p81, %p82
    %p84 = scmp.ne.s32.totalorder %s73, %s74
    %p85 = scmp.eq.s32.totalorder %s13, 0
    %p86 = por %p84, %p85
    %p87 = scmp.ne.s32.totalorder %s73, %s74
    %p88 = scmp.eq.s32.totalorder %s14, 1
    %p89 = por %p87, %p88
    %p91 = scmp.ne.s32.totalorder %s74, %s90
    %p92 = scmp.eq.s32.totalorder %s14, 0
    %p93 = por %p91, %p92
    %p94 = scmp.le.s32.totalorder 1, %s8
    %p95 = scmp.lt.s32.totalorder %s8, 3
    %p96 = pnand %p94, %p95
    %p97 = pneg %p96
    // Predicated region
    $region9: #{perceptual_loss.1} parent=5 // pred_check
      _
    $region10: #{perceptual_loss.1} parent=5 // pred_check_branch
      %99 = sbr.rel (%p96) target = $region12
    $region11: #{perceptual_loss.1} parent=5 // pred_region
      %s100 = ssub.s32 %s8, 1
    $region12: #{perceptual_loss.1} parent=5 // pred_fallthru
      _
    %p101 = scmp.lt.s32.totalorder %s8, 2
    // Predicated region
    $region13: #{perceptual_loss.1} parent=5 // pred_check
      %p102 = pneg %p101
    $region14: #{perceptual_loss.1} parent=5 // pred_check_branch
      %104 = sbr.rel (%p102) target = $region16
    $region15: #{perceptual_loss.1} parent=5 // pred_region
      // Predicated region
      $region17: #{perceptual_loss.1} parent=15 // pred_check
        %p105 = pneg %p28
      $region18: #{perceptual_loss.1} parent=15 // pred_check_branch
        %107 = sbr.rel (%p105) target = $region20
      $region19: #{perceptual_loss.1} parent=15 // pred_region
        %p108 = scmp.lt.s32.totalorder %s8, 1
        %s109 = scalar_select %p108, %s8, 1
        %s110 = smul.addr %s109, 8
        %s111 = scalar_lea.vmem %s0, %s110
      $region20: #{perceptual_loss.1} parent=15 // pred_fallthru
        _
      // Predicated region
      $region21: #{perceptual_loss.1} parent=15 // pred_check
        %p112 = pneg %p54
      $region22: #{perceptual_loss.1} parent=15 // pred_check_branch
        %114 = sbr.rel (%p112) target = $region24
      $region23: #{perceptual_loss.1} parent=15 // pred_region
        %p115 = scmp.lt.s32.totalorder %s8, 1
        %s116 = scalar_select %p115, %s8, 1
        %s117 = smul.addr %s116, 8
        %s118 = scalar_lea.vmem %s1, %s117
      $region24: #{perceptual_loss.1} parent=15 // pred_fallthru
        _
    $region16: #{perceptual_loss.1} parent=5 // pred_fallthru
      _
    %p119 = scmp.le.s32.totalorder 1, %s8
    %p120 = scmp.lt.s32.totalorder %s8, 3
    %p121 = pnand %p119, %p120
    %p122 = pneg %p121
    // Predicated region
    $region25: #{perceptual_loss.1} parent=5 // pred_check
      _
    $region26: #{perceptual_loss.1} parent=5 // pred_check_branch
      %124 = sbr.rel (%p121) target = $region28
    $region27: #{perceptual_loss.1} parent=5 // pred_region
      %s125 = ssub.s32 %s8, 1
      %p126 = scmp.lt.s32.totalorder %s13, 1
      %s127 = scalar_select %p126, %s13, 1
      %s128 = smul.addr %s127, 8
      %s129 = scalar_lea.vmem %s0, %s128
      %p130 = pneg %p34
      %p131 = pneg %p31
      %p132 = scmp.lt.s32.totalorder %s13, 1
      %s133 = scalar_select %p132, %s13, 1
      %s134 = smul.addr %s133, 8
      %s135 = scalar_lea.vmem %s1, %s134
      %p136 = pneg %p60
      %p137 = pneg %p57
      %p138 = pneg %p86
      %p139 = pneg %p83
      %p140 = scmp.lt.s32.totalorder %s13, 1
      %s141 = scalar_select %p140, %s13, 1
      %s142 = smul.addr %s141, 8
      %s143 = scalar_lea.vmem %s2, %s142
      %p144 = scmp.lt.s32.totalorder %s13, 1
      %s145 = scalar_select %p144, %s13, 1
      %s146 = smul.addr %s145, 8
      %s147 = scalar_lea.vmem %s0, %s146
      %p148 = scmp.lt.s32.totalorder %s13, 1
      %s149 = scalar_select %p148, %s13, 1
      %s150 = smul.addr %s149, 8
      %s151 = scalar_lea.vmem %s1, %s150
      %p152 = scmp.lt.s32.totalorder %s13, 1
      %s153 = scalar_select %p152, %s13, 1
      %s154 = smul.addr %s153, 8
      %s155 = scalar_lea.vmem %s2, %s154
      %v156 = vld [vmem:[%s147] sm:$0xff]
      %v157 = vmax.f32 %v156, 0.0
      %v158 = vld [vmem:[%s151] sm:$0xff]
      %v159 = vmax.f32 %v158, 0.0
      %v160 = vsub.f32 %v157, %v159
      %v161 = vmul.f32 %v160, %v160
      %s162 = smul.u32 %s13, 8
      %v163 = vlaneseq
      %v164 = vshrl.u32 %v163, 7
      %v165 = vstv %s162
      %v166 = vadd.s32 %v165, %v164
      %vm167 = vcmp.lt.s32.totalorder %v166, 12
      %v168 = vsel %vm167, 1, 0
      %vm169 = vcmp.eq.s32.totalorder %v168, 1
      %v170 = vsel %vm169, %v161, 0.0
      %v171 = vadd.f32 %v170, 0.0
      %172 = vst [vmem:[%s155] sm:$0xff] %v171
      %p173 = scmp.lt.s32.totalorder %s13, 1
      %s174 = scalar_select %p173, %s13, 1
      %s175 = smul.addr %s174, 8
      %s176 = scalar_lea.vmem %s2, %s175
      // Predicated region
      $region29: #{perceptual_loss.1} parent=27 // pred_check
        %p177 = pneg %p83
      $region30: #{perceptual_loss.1} parent=27 // pred_check_branch
        %179 = sbr.rel (%p177) target = $region32
      $region31: #{perceptual_loss.1} parent=27 // pred_region
        _
      $region32: #{perceptual_loss.1} parent=27 // pred_fallthru
        _
    $region28: #{perceptual_loss.1} parent=5 // pred_fallthru
      _
    %p180 = scmp.le.s32.totalorder 2, %s8
    // Predicated region
    $region33: #{perceptual_loss.1} parent=5 // pred_check
      %p181 = pneg %p180
    $region34: #{perceptual_loss.1} parent=5 // pred_check_branch
      %183 = sbr.rel (%p181) target = $region36
    $region35: #{perceptual_loss.1} parent=5 // pred_region
      %s184 = ssub.s32 %s8, 2
      // Predicated region
      $region37: #{perceptual_loss.1} parent=35 // pred_check
        %p185 = pneg %p89
      $region38: #{perceptual_loss.1} parent=35 // pred_check_branch
        %187 = sbr.rel (%p185) target = $region40
      $region39: #{perceptual_loss.1} parent=35 // pred_region
        %p188 = scmp.lt.s32.totalorder %s14, 1
        %s189 = scalar_select %p188, %s14, 1
        %s190 = smul.addr %s189, 8
        %s191 = scalar_lea.vmem %s2, %s190
      $region40: #{perceptual_loss.1} parent=35 // pred_fallthru
        _
    $region36: #{perceptual_loss.1} parent=5 // pred_fallthru
      _
  $region6: #{perceptual_loss.1} parent=0 // loop_footer
    %s12 = sadd.s32 1, %s8
  $region7: #{perceptual_loss.1} parent=0 // loop_footer_branch
    %7 = sbr.rel target = $region3
  $region8: #{perceptual_loss.1} parent=0 // loop_exit
    _

</llo_original>
